<compile_context>
chip_gen: v6e
topology: v6e:2x2x1
jax: 0.10.0
libtpu: 0.0.40
codegen_flags: <defaults>
</compile_context>

<pallas_src>
import jax
import jax.numpy as jnp
from jax.experimental import pallas as pl
from jax.experimental.pallas import tpu as pltpu


def _round_up(x: int, m: int) -> int:
    return ((x + m - 1) // m) * m


def agent_kernel(s_ref, w1_ref, b1_ref, w2_ref, b2_ref, wh_ref, bh_ref, out_ref):
    # in-kernel cast: read the f32 state tile once from HBM, feed MXU in bf16
    s = s_ref[...].astype(jnp.bfloat16)
    # trunk layer 1: bf16 MXU matmul, f32 accumulate, f32 bias + ReLU
    x = jnp.dot(s, w1_ref[...], preferred_element_type=jnp.float32)
    x = jnp.maximum(x + b1_ref[...], 0.0).astype(jnp.bfloat16)
    # trunk layer 2
    x = jnp.dot(x, w2_ref[...], preferred_element_type=jnp.float32)
    x = jnp.maximum(x + b2_ref[...], 0.0).astype(jnp.bfloat16)
    # fused forward||backward policy heads -> single lane-dense f32 output slab
    out_ref[...] = (jnp.dot(x, wh_ref[...], preferred_element_type=jnp.float32)
                    + bh_ref[...]).astype(out_ref.dtype)


def agent_forward(s, params, *, block_batch=512):
    """s: (batch, state_dim) f32. params: dict of weights/biases.

    Returns (f_logits, b_logits), each (batch, num_actions) f32.
    """
    batch, state_dim = s.shape
    hidden = params["w1"].shape[1]
    num_actions = params["wf"].shape[1]

    # --- pad hidden to a lane-dense width (zero cols/rows => identical math)
    hid_pad = max(128, _round_up(hidden, 128))
    w1 = jnp.zeros((state_dim, hid_pad), jnp.float32).at[:, :hidden].set(params["w1"])
    b1 = jnp.zeros((1, hid_pad), jnp.float32).at[:, :hidden].set(params["b1"])
    w2 = jnp.zeros((hid_pad, hid_pad), jnp.float32).at[:hidden, :hidden].set(params["w2"])
    b2 = jnp.zeros((1, hid_pad), jnp.float32).at[:, :hidden].set(params["b2"])

    # --- fuse the two heads and pad to a lane-dense (>=128) width
    head_width = 2 * num_actions
    head_pad = max(128, _round_up(head_width, 128))
    wh = jnp.zeros((hid_pad, head_pad), jnp.float32)
    wh = wh.at[:hidden, :num_actions].set(params["wf"])
    wh = wh.at[:hidden, num_actions:head_width].set(params["wb"])
    bh = jnp.zeros((1, head_pad), jnp.float32)
    bh = bh.at[:, :num_actions].set(params["bf"])
    bh = bh.at[:, num_actions:head_width].set(params["bb"])

    # --- bf16 MXU weight operands (tiny, one-time), f32 biases
    w1 = w1.astype(jnp.bfloat16)
    w2 = w2.astype(jnp.bfloat16)
    wh = wh.astype(jnp.bfloat16)

    # --- batch tile: multiple of 8 sublanes, capped at block_batch; pad the
    #     batch so the grid divides evenly.
    tb = min(block_batch, _round_up(batch, 8))
    batch_pad = _round_up(batch, tb)
    if batch_pad != batch:
        s = jnp.pad(s, ((0, batch_pad - batch), (0, 0)))

    grid = (batch_pad // tb,)

    out = pl.pallas_call(
        agent_kernel,
        out_shape=jax.ShapeDtypeStruct((batch_pad, head_pad), jnp.float32),
        grid=grid,
        in_specs=[
            pl.BlockSpec((tb, state_dim), lambda i: (i, 0)),       # state tile (f32)
            pl.BlockSpec((state_dim, hid_pad), lambda i: (0, 0)),  # w1 (resident)
            pl.BlockSpec((1, hid_pad), lambda i: (0, 0)),          # b1
            pl.BlockSpec((hid_pad, hid_pad), lambda i: (0, 0)),    # w2
            pl.BlockSpec((1, hid_pad), lambda i: (0, 0)),          # b2
            pl.BlockSpec((hid_pad, head_pad), lambda i: (0, 0)),   # fused head W
            pl.BlockSpec((1, head_pad), lambda i: (0, 0)),         # fused head b
        ],
        out_specs=pl.BlockSpec((tb, head_pad), lambda i: (i, 0)),
        compiler_params=pltpu.CompilerParams(
            dimension_semantics=("parallel",)),
    )(s, w1, b1, w2, b2, wh, bh)

    f_logits = out[:batch, :num_actions]
    b_logits = out[:batch, num_actions:head_width]
    return f_logits, b_logits


def init_params(key, state_dim, hidden_dim, num_actions):
    ks = jax.random.split(key, 4)
    scale = 0.1
    # biases kept 2-D (1, out) for clean VMEM layout / broadcasting
    params = {
        "w1": scale * jax.random.normal(ks[0], (state_dim, hidden_dim), jnp.float32),
        "b1": jnp.zeros((1, hidden_dim), jnp.float32),
        "w2": scale * jax.random.normal(ks[1], (hidden_dim, hidden_dim), jnp.float32),
        "b2": jnp.zeros((1, hidden_dim), jnp.float32),
        "wf": scale * jax.random.normal(ks[2], (hidden_dim, num_actions), jnp.float32),
        "bf": jnp.zeros((1, num_actions), jnp.float32),
        "wb": scale * jax.random.normal(ks[3], (hidden_dim, num_actions), jnp.float32),
        "bb": jnp.zeros((1, num_actions), jnp.float32),
    }
    # log_z parameter exists in the module but is unused by forward(); omitted here.
    return params


def reference_forward_f32(s, p):
    x = jnp.maximum(s @ p["w1"] + p["b1"], 0.0)
    x = jnp.maximum(x @ p["w2"] + p["b2"], 0.0)
    return x @ p["wf"] + p["bf"], x @ p["wb"] + p["bb"]


def reference_forward_bf16(s, p):
    # emulates the kernel's numerics: bf16 operands, f32 accumulation
    bf = jnp.bfloat16
    x = jnp.dot(s.astype(bf), p["w1"].astype(bf), preferred_element_type=jnp.float32)
    x = jnp.maximum(x + p["b1"], 0.0)
    x = jnp.dot(x.astype(bf), p["w2"].astype(bf), preferred_element_type=jnp.float32)
    x = jnp.maximum(x + p["b2"], 0.0)
    xb = x.astype(bf)
    f = jnp.dot(xb, p["wf"].astype(bf), preferred_element_type=jnp.float32) + p["bf"]
    b = jnp.dot(xb, p["wb"].astype(bf), preferred_element_type=jnp.float32) + p["bb"]
    return f, b


if __name__ == "__main__":
    batch = 8
    state_dim = 110       # 10 slots * one-hot(11), per reset()
    hidden_dim = 32
    num_actions = 10

    key = jax.random.PRNGKey(0)
    k_state, k_params = jax.random.split(key)
    params = init_params(k_params, state_dim, hidden_dim, num_actions)

    # valid initial state like reset(batch): all slots one-hot at index 0
    state_idx = jnp.zeros((batch, 10), jnp.int32)
    s = jax.nn.one_hot(state_idx, 11).reshape(batch, -1).astype(jnp.float32)

    f_logits, b_logits = agent_forward(s, params)
    jax.block_until_ready((f_logits, b_logits))

    assert f_logits.shape == (batch, num_actions)
    assert b_logits.shape == (batch, num_actions)

    # exact-numerics check against a bf16-operand / f32-accumulate reference
    f_r16, b_r16 = reference_forward_bf16(s, params)
    assert jnp.allclose(f_logits, f_r16, atol=1e-3, rtol=1e-3)
    assert jnp.allclose(b_logits, b_r16, atol=1e-3, rtol=1e-3)

    # semantics check against the pure-f32 PyTorch-equivalent math
    f_r32, b_r32 = reference_forward_f32(s, params)
    assert jnp.allclose(f_logits, f_r32, atol=3e-2, rtol=3e-2)
    assert jnp.allclose(b_logits, b_r32, atol=3e-2, rtol=3e-2)

    print("KERNEL_OK")
</pallas_src>

<mosaic_0001>
module attributes {stable_mosaic.version = 11 : i64} {
  func.func @agent_kernel(%arg0: i32, %arg1: memref<8x110xf32, #tpu.memory_space<vmem>>, %arg2: memref<110x128xbf16, #tpu.memory_space<vmem>>, %arg3: memref<1x128xf32, #tpu.memory_space<vmem>>, %arg4: memref<128x128xbf16, #tpu.memory_space<vmem>>, %arg5: memref<1x128xf32, #tpu.memory_space<vmem>>, %arg6: memref<128x128xbf16, #tpu.memory_space<vmem>>, %arg7: memref<1x128xf32, #tpu.memory_space<vmem>>, %arg8: memref<8x128xf32, #tpu.memory_space<vmem>>) attributes {dimension_semantics = [#tpu.dimension_semantics<parallel>], iteration_bounds = array<i64: 1>, scalar_prefetch = 0 : i64, scratch_operands = 0 : i64, tpu.core_type = #tpu.core_type<tc>, window_params = [{transform_indices = @transform_0, window_bounds = array<i64: 8, 110>}, {pipeline_mode = #tpu.pipeline_mode<synchronous>, transform_indices = @transform_1, window_bounds = array<i64: 110, 128>}, {pipeline_mode = #tpu.pipeline_mode<synchronous>, transform_indices = @transform_2, window_bounds = array<i64: 1, 128>}, {pipeline_mode = #tpu.pipeline_mode<synchronous>, transform_indices = @transform_3, window_bounds = array<i64: 128, 128>}, {pipeline_mode = #tpu.pipeline_mode<synchronous>, transform_indices = @transform_4, window_bounds = array<i64: 1, 128>}, {pipeline_mode = #tpu.pipeline_mode<synchronous>, transform_indices = @transform_5, window_bounds = array<i64: 128, 128>}, {pipeline_mode = #tpu.pipeline_mode<synchronous>, transform_indices = @transform_6, window_bounds = array<i64: 1, 128>}, {transform_indices = @transform_7, window_bounds = array<i64: 8, 128>}]} {
    %c0 = arith.constant 0 : index
    %c0_0 = arith.constant 0 : index
    %0 = vector.load %arg1[%c0, %c0_0] : memref<8x110xf32, #tpu.memory_space<vmem>>, vector<8x110xf32>
    %1 = arith.truncf %0 : vector<8x110xf32> to vector<8x110xbf16>
    %c0_1 = arith.constant 0 : index
    %c0_2 = arith.constant 0 : index
    %2 = vector.load %arg2[%c0_1, %c0_2] : memref<110x128xbf16, #tpu.memory_space<vmem>>, vector<110x128xbf16>
    %cst = arith.constant dense<0.000000e+00> : vector<8x128xf32>
    %3 = tpu.matmul %1, %2, %cst {dimension_numbers = #tpu.dot_dimension_numbers<[1], [0], [0], [1], [0, 0, 1, 1], [], []>} : vector<8x110xbf16>, vector<110x128xbf16>, vector<8x128xf32> -> vector<8x128xf32>
    %c0_3 = arith.constant 0 : index
    %c0_4 = arith.constant 0 : index
    %4 = vector.load %arg3[%c0_3, %c0_4] : memref<1x128xf32, #tpu.memory_space<vmem>>, vector<1x128xf32>
    %5 = vector.broadcast %4 : vector<1x128xf32> to vector<8x128xf32>
    %6 = arith.addf %3, %5 : vector<8x128xf32>
    %cst_5 = arith.constant 0.000000e+00 : f32
    %7 = vector.broadcast %cst_5 : f32 to vector<8x128xf32>
    %8 = arith.maximumf %6, %7 : vector<8x128xf32>
    %9 = arith.truncf %8 : vector<8x128xf32> to vector<8x128xbf16>
    %c0_6 = arith.constant 0 : index
    %c0_7 = arith.constant 0 : index
    %10 = vector.load %arg4[%c0_6, %c0_7] : memref<128x128xbf16, #tpu.memory_space<vmem>>, vector<128x128xbf16>
    %cst_8 = arith.constant dense<0.000000e+00> : vector<8x128xf32>
    %11 = tpu.matmul %9, %10, %cst_8 {dimension_numbers = #tpu.dot_dimension_numbers<[1], [0], [0], [1], [0, 0, 1, 1], [], []>} : vector<8x128xbf16>, vector<128x128xbf16>, vector<8x128xf32> -> vector<8x128xf32>
    %c0_9 = arith.constant 0 : index
    %c0_10 = arith.constant 0 : index
    %12 = vector.load %arg5[%c0_9, %c0_10] : memref<1x128xf32, #tpu.memory_space<vmem>>, vector<1x128xf32>
    %13 = vector.broadcast %12 : vector<1x128xf32> to vector<8x128xf32>
    %14 = arith.addf %11, %13 : vector<8x128xf32>
    %cst_11 = arith.constant 0.000000e+00 : f32
    %15 = vector.broadcast %cst_11 : f32 to vector<8x128xf32>
    %16 = arith.maximumf %14, %15 : vector<8x128xf32>
    %17 = arith.truncf %16 : vector<8x128xf32> to vector<8x128xbf16>
    %c0_12 = arith.constant 0 : index
    %c0_13 = arith.constant 0 : index
    %18 = vector.load %arg6[%c0_12, %c0_13] : memref<128x128xbf16, #tpu.memory_space<vmem>>, vector<128x128xbf16>
    %cst_14 = arith.constant dense<0.000000e+00> : vector<8x128xf32>
    %19 = tpu.matmul %17, %18, %cst_14 {dimension_numbers = #tpu.dot_dimension_numbers<[1], [0], [0], [1], [0, 0, 1, 1], [], []>} : vector<8x128xbf16>, vector<128x128xbf16>, vector<8x128xf32> -> vector<8x128xf32>
    %c0_15 = arith.constant 0 : index
    %c0_16 = arith.constant 0 : index
    %20 = vector.load %arg7[%c0_15, %c0_16] : memref<1x128xf32, #tpu.memory_space<vmem>>, vector<1x128xf32>
    %21 = vector.broadcast %20 : vector<1x128xf32> to vector<8x128xf32>
    %22 = arith.addf %19, %21 : vector<8x128xf32>
    %c0_17 = arith.constant 0 : index
    %c0_18 = arith.constant 0 : index
    %23 = vector.load %arg8[%c0_17, %c0_18] : memref<8x128xf32, #tpu.memory_space<vmem>>, vector<8x128xf32>
    tpu.vector_store %arg8[%c0_17, %c0_18], %22 {strides = array<i32>} : memref<8x128xf32, #tpu.memory_space<vmem>>, vector<8x128xf32>,
    return
  }
  func.func @transform_0(%arg0: i32) -> (i32, i32) {
    %c0_i32 = arith.constant 0 : i32
    %c0_i32_0 = arith.constant 0 : i32
    return %arg0, %c0_i32 : i32, i32
  }
  func.func @transform_1(%arg0: i32) -> (i32, i32) {
    %c0_i32 = arith.constant 0 : i32
    %c0_i32_0 = arith.constant 0 : i32
    %c0_i32_1 = arith.constant 0 : i32
    return %c0_i32, %c0_i32_0 : i32, i32
  }
  func.func @transform_2(%arg0: i32) -> (i32, i32) {
    %c0_i32 = arith.constant 0 : i32
    %c0_i32_0 = arith.constant 0 : i32
    %c0_i32_1 = arith.constant 0 : i32
    return %c0_i32, %c0_i32_0 : i32, i32
  }
  func.func @transform_3(%arg0: i32) -> (i32, i32) {
    %c0_i32 = arith.constant 0 : i32
    %c0_i32_0 = arith.constant 0 : i32
    %c0_i32_1 = arith.constant 0 : i32
    return %c0_i32, %c0_i32_0 : i32, i32
  }
  func.func @transform_4(%arg0: i32) -> (i32, i32) {
    %c0_i32 = arith.constant 0 : i32
    %c0_i32_0 = arith.constant 0 : i32
    %c0_i32_1 = arith.constant 0 : i32
    return %c0_i32, %c0_i32_0 : i32, i32
  }
  func.func @transform_5(%arg0: i32) -> (i32, i32) {
    %c0_i32 = arith.constant 0 : i32
    %c0_i32_0 = arith.constant 0 : i32
    %c0_i32_1 = arith.constant 0 : i32
    return %c0_i32, %c0_i32_0 : i32, i32
  }
  func.func @transform_6(%arg0: i32) -> (i32, i32) {
    %c0_i32 = arith.constant 0 : i32
    %c0_i32_0 = arith.constant 0 : i32
    %c0_i32_1 = arith.constant 0 : i32
    return %c0_i32, %c0_i32_0 : i32, i32
  }
  func.func @transform_7(%arg0: i32) -> (i32, i32) {
    %c0_i32 = arith.constant 0 : i32
    %c0_i32_0 = arith.constant 0 : i32
    return %arg0, %c0_i32 : i32, i32
  }
}

</mosaic_0001>

<llo_original>
// kernel: tpu_custom_call.1
$region0: #{tpu_custom_call.1}
  #allocation0 [shape = 'u32[]', space=smem, size = 0x4, offset = 0x4, fixed_abs, tag = 'smem constant byte address 0x4 - core index']
  #allocation1 [shape = 'u32[144,128]{1,0:T(1,128)}', space=vmem, size = 0x12000, scoped, tag = 'internal scratch']
  %s0 = inlined_call_operand.hbm [shape: f32[8,110], index: 0, kind: input, shape index: {}]
  %s1 = inlined_call_operand.hbm [shape: bf16[110,128], index: 1, kind: input, shape index: {}]
  %s2 = inlined_call_operand.vmem [shape: f32[1,128], index: 2, kind: input, shape index: {}]
  %s3 = inlined_call_operand.hbm [shape: bf16[128,128], index: 3, kind: input, shape index: {}]
  %s4 = inlined_call_operand.vmem [shape: f32[1,128], index: 4, kind: input, shape index: {}]
  %s5 = inlined_call_operand.hbm [shape: bf16[128,128], index: 5, kind: input, shape index: {}]
  %s6 = inlined_call_operand.vmem [shape: f32[1,128], index: 6, kind: input, shape index: {}]
  %s7 = inlined_call_operand.hbm [shape: f32[8,128], index: 7, kind: output, shape index: {}]
  %s8 = sld [smem:[#allocation0]]
  $region54: #{tpu_custom_call.1} parent=0
    _
  %s10 = ssub.s32 1, %s8
  %s11 = scalar_select 0, %s10, %s8
  $region1: #{tpu_custom_call.1} parent=0
    #allocation2 [shape = 'u8[4096]{0}', space=vmem, size = 0x1000, scoped, tag = 'input window, operand 0, single buffered']
    #allocation3 [shape = 's32[1]{0}', space=sflag, size = 0x4, scoped, tag = 'scoped memory for tpu_custom_call.1']
    #allocation4 [shape = 's32[1]{0}', space=sflag, size = 0x4, scoped, tag = 'scoped memory for tpu_custom_call.1']
    #allocation5 [shape = 'u8[28672]{0}', space=vmem, size = 0x7000, scoped, tag = 'input window, operand 1, single buffered']
    #allocation6 [shape = 's32[1]{0}', space=sflag, size = 0x4, scoped, tag = 'scoped memory for tpu_custom_call.1']
    #allocation7 [shape = 'u8[32768]{0}', space=vmem, size = 0x8000, scoped, tag = 'input window, operand 3, single buffered']
    #allocation8 [shape = 'u8[32768]{0}', space=vmem, size = 0x8000, scoped, tag = 'input window, operand 5, single buffered']
    #allocation9 [shape = 's32[1]{0}', space=sflag, size = 0x4, scoped, tag = 'scoped memory for tpu_custom_call.1']
    #allocation10 [shape = 'u8[4096]{0}', space=vmem, size = 0x1000, scoped, tag = 'output window, operand 0, single buffered']
    %12 = vsyncpa [#allocation3], 0
    %13 = vsyncpa [#allocation6], 0
    %14 = vsyncpa [#allocation9], 0
    %15 = vsyncpa [#allocation4], 0
    // Predicated region
    $region2: #{tpu_custom_call.1} parent=1 // pred_check
      _
    $region3: #{tpu_custom_call.1} parent=1 // pred_check_branch
      %17 = sbr.rel (0) target = $region5
    $region4: #{tpu_custom_call.1} parent=1 // pred_region
      %s19 = ssub.s32 128, 128
      %20 = vsyncadd [#allocation3], %s19
      %s22 = sshll.u32 [#allocation2], 4
      %s23 = int_to_ptr.vmem [resolvable:$true] %s22
      %25 = dma.hbm_to_vmem [thread:$0]  %s0, 128, %s23, [#allocation3]
    $region5: #{tpu_custom_call.1} parent=1 // pred_fallthru
      _
    // Predicated region
    $region6: #{tpu_custom_call.1} parent=1 // pred_check
      _
    $region7: #{tpu_custom_call.1} parent=1 // pred_check_branch
      %27 = sbr.rel (0) target = $region9
    $region8: #{tpu_custom_call.1} parent=1 // pred_region
      %s29 = ssub.s32 896, 896
      %30 = vsyncadd [#allocation6], %s29
      %s31 = sshll.u32 [#allocation5], 4
      %s32 = int_to_ptr.vmem [resolvable:$true] %s31
      %37 = dma.hbm_to_vmem [thread:$0]  %s1, 896, %s32, [#allocation6], 64, 64, 4
    $region9: #{tpu_custom_call.1} parent=1 // pred_fallthru
      _
    // Predicated region
    $region10: #{tpu_custom_call.1} parent=1 // pred_check
      _
    $region11: #{tpu_custom_call.1} parent=1 // pred_check_branch
      %39 = sbr.rel (0) target = $region13
    $region12: #{tpu_custom_call.1} parent=1 // pred_region
      _
    $region13: #{tpu_custom_call.1} parent=1 // pred_fallthru
      _
    // Predicated region
    $region14: #{tpu_custom_call.1} parent=1 // pred_check
      _
    $region15: #{tpu_custom_call.1} parent=1 // pred_check_branch
      %41 = sbr.rel (0) target = $region17
    $region16: #{tpu_custom_call.1} parent=1 // pred_region
      %s43 = ssub.s32 1024, 1024
      %44 = vsyncadd [#allocation6], %s43
      %s45 = sshll.u32 [#allocation7], 4
      %s46 = int_to_ptr.vmem [resolvable:$true] %s45
      %51 = dma.hbm_to_vmem [thread:$0]  %s3, 1024, %s46, [#allocation6], 64, 64, 4
    $region17: #{tpu_custom_call.1} parent=1 // pred_fallthru
      _
    // Predicated region
    $region18: #{tpu_custom_call.1} parent=1 // pred_check
      _
    $region19: #{tpu_custom_call.1} parent=1 // pred_check_branch
      %53 = sbr.rel (0) target = $region21
    $region20: #{tpu_custom_call.1} parent=1 // pred_region
      _
    $region21: #{tpu_custom_call.1} parent=1 // pred_fallthru
      _
    // Predicated region
    $region22: #{tpu_custom_call.1} parent=1 // pred_check
      _
    $region23: #{tpu_custom_call.1} parent=1 // pred_check_branch
      %55 = sbr.rel (0) target = $region25
    $region24: #{tpu_custom_call.1} parent=1 // pred_region
      %s57 = ssub.s32 1024, 1024
      %58 = vsyncadd [#allocation9], %s57
      %s59 = sshll.u32 [#allocation8], 4
      %s60 = int_to_ptr.vmem [resolvable:$true] %s59
      %65 = dma.hbm_to_vmem [thread:$0]  %s5, 1024, %s60, [#allocation9], 64, 64, 4
    $region25: #{tpu_custom_call.1} parent=1 // pred_fallthru
      _
    // Predicated region
    $region26: #{tpu_custom_call.1} parent=1 // pred_check
      _
    $region27: #{tpu_custom_call.1} parent=1 // pred_check_branch
      %67 = sbr.rel (0) target = $region29
    $region28: #{tpu_custom_call.1} parent=1 // pred_region
      _
    $region29: #{tpu_custom_call.1} parent=1 // pred_fallthru
      _
    // Predicated region
    $region30: #{tpu_custom_call.1} parent=1 // pred_check
      _
    $region31: #{tpu_custom_call.1} parent=1 // pred_check_branch
      %69 = sbr.rel (0) target = $region33
    $region32: #{tpu_custom_call.1} parent=1 // pred_region
      %70 = dma.done [#allocation3], 128
    $region33: #{tpu_custom_call.1} parent=1 // pred_fallthru
      _
    // Predicated region
    $region34: #{tpu_custom_call.1} parent=1 // pred_check
      _
    $region35: #{tpu_custom_call.1} parent=1 // pred_check_branch
      %72 = sbr.rel (0) target = $region37
    $region36: #{tpu_custom_call.1} parent=1 // pred_region
      %73 = dma.done [#allocation6], 896
    $region37: #{tpu_custom_call.1} parent=1 // pred_fallthru
      _
    // Predicated region
    $region38: #{tpu_custom_call.1} parent=1 // pred_check
      _
    $region39: #{tpu_custom_call.1} parent=1 // pred_check_branch
      %75 = sbr.rel (0) target = $region41
    $region40: #{tpu_custom_call.1} parent=1 // pred_region
      %76 = dma.done [#allocation6], 1024
    $region41: #{tpu_custom_call.1} parent=1 // pred_fallthru
      _
    // Predicated region
    $region42: #{tpu_custom_call.1} parent=1 // pred_check
      _
    $region43: #{tpu_custom_call.1} parent=1 // pred_check_branch
      %78 = sbr.rel (0) target = $region45
    $region44: #{tpu_custom_call.1} parent=1 // pred_region
      %79 = dma.done [#allocation9], 1024
    $region45: #{tpu_custom_call.1} parent=1 // pred_fallthru
      _
    %v81 = vld [vmem:[#allocation2] sm:$0xff]
    %v82 = vpack.c.bf16 %v81, %v81
    %v83 = vld [vmem:[#allocation5] sm:$0xf]
    %v84 = vld [vmem:[#allocation5 + $0x4] sm:$0xf]
    %v85 = vld [vmem:[#allocation5 + $0x8] sm:$0xf]
    %v86 = vld [vmem:[#allocation5 + $0xc] sm:$0xf]
    %v87 = vld [vmem:[#allocation5 + $0x10] sm:$0xf]
    %v88 = vld [vmem:[#allocation5 + $0x14] sm:$0xf]
    %v89 = vld [vmem:[#allocation5 + $0x18] sm:$0xf]
    %v90 = vld [vmem:[#allocation5 + $0x1c] sm:$0xf]
    %v91 = vld [vmem:[#allocation5 + $0x20] sm:$0xf]
    %v92 = vld [vmem:[#allocation5 + $0x24] sm:$0xf]
    %v93 = vld [vmem:[#allocation5 + $0x28] sm:$0xf]
    %v94 = vld [vmem:[#allocation5 + $0x2c] sm:$0xf]
    %v95 = vld [vmem:[#allocation5 + $0x30] sm:$0xf]
    %v96 = vld [vmem:[#allocation5 + $0x34] sm:$0x7]
    %v97 = vld [vmem:[%s2] sm:$0x1]
    %v99 = vlaneseq
    %v100 = vshrl.u32 %v99, 7
    %v101 = vsub.s32 0, %v100
    %v102 = vrot.slane %v97, %v101
    %v118 = vunpack.c.l.b16 %v83
    %v119 = vunpack.c.l.b16 %v84
    %v120 = vunpack.c.l.b16 %v85
    %v121 = vunpack.c.l.b16 %v86
    %v122 = vunpack.c.l.b16 %v87
    %v123 = vunpack.c.l.b16 %v88
    %v124 = vunpack.c.l.b16 %v89
    %v125 = vunpack.c.l.b16 %v90
    %v126 = vunpack.c.l.b16 %v91
    %v127 = vunpack.c.l.b16 %v92
    %v128 = vunpack.c.l.b16 %v93
    %v129 = vunpack.c.l.b16 %v94
    %v130 = vunpack.c.l.b16 %v95
    %v131 = vunpack.c.l.b16 %v96
    %v132 = vpack.c.b16 %v119, %v118
    %v133 = vpack.c.b16 %v121, %v120
    %v134 = vpack.c.b16 %v123, %v122
    %v135 = vpack.c.b16 %v125, %v124
    %v136 = vpack.c.b16 %v127, %v126
    %v137 = vpack.c.b16 %v129, %v128
    %v138 = vpack.c.b16 %v131, %v130
    %vm145 = vcmask 900096
    %v147 = vsel %vm145, %v82, 0
    %vm149 = vcmask 1046528
    %v151 = vsel %vm149, %v138, 0
    %153 = vmatprep.subr.bf16.mxu0 0
    %154 = vmatpush1.bf16.msra.mxu0 0
    %155 = vmatprep.subr.bf16.mxu0 0
    %156 = vmatpush1.bf16.msra.mxu0 %v151
    %157 = vmatprep.subr.bf16.mxu0 0
    %158 = vmatpush1.bf16.msra.mxu0 %v137
    %159 = vmatprep.subr.bf16.mxu0 0
    %160 = vmatpush1.bf16.msra.mxu0 %v136
    %161 = vmatprep.subr.bf16.mxu0 0
    %162 = vmatpush1.bf16.msra.mxu0 %v135
    %163 = vmatprep.subr.bf16.mxu0 0
    %164 = vmatpush1.bf16.msra.mxu0 %v134
    %165 = vmatprep.subr.bf16.mxu0 0
    %166 = vmatpush1.bf16.msra.mxu0 %v133
    %167 = vmatprep.subr.bf16.mxu0 0
    %168 = vmatpush1.bf16.msra.mxu0 %v132
    %169 = vmatprep.subr.bf16.mxu0 0
    %170 = vmatpush2.bf16.msra.mxu0 0
    %171 = vmatprep.subr.bf16.mxu0 0
    %172 = vmatpush2.bf16.msra.mxu0 0
    %173 = vmatprep.subr.bf16.mxu0 0
    %174 = vmatpush2.bf16.msra.mxu0 0
    %175 = vmatprep.subr.bf16.mxu0 0
    %176 = vmatpush2.bf16.msra.mxu0 0
    %177 = vmatprep.subr.bf16.mxu0 0
    %178 = vmatpush2.bf16.msra.mxu0 0
    %179 = vmatprep.subr.bf16.mxu0 0
    %180 = vmatpush2.bf16.msra.mxu0 0
    %181 = vmatprep.subr.bf16.mxu0 0
    %182 = vmatpush2.bf16.msra.mxu0 0
    %183 = vmatprep.subr.bf16.mxu0 0
    %184 = vmatpush2.bf16.msra.mxu0 0
    %185 = vmatprep.mubr.bf16.mxu0 0
    %186 = vmatmul.mubr.bf16.gmra.mxu0 %v147
    %v187 = vpop.f32.mrf.mxu0
    %v188 = vadd.f32 %v102, %v187
    %v189 = vpop.f32.mrf.mxu0
    %v190 = vpop.f32.mrf.mxu0
    %v191 = vpop.f32.mrf.mxu0
    %192 = vdwg.mxu0
    %v193 = vmax.f32 %v188, 0.0
    %v194 = vpack.c.bf16 %v193, %v193
    %v195 = vld [vmem:[#allocation7] sm:$0xf]
    %v196 = vld [vmem:[#allocation7 + $0x4] sm:$0xf]
    %v197 = vld [vmem:[#allocation7 + $0x8] sm:$0xf]
    %v198 = vld [vmem:[#allocation7 + $0xc] sm:$0xf]
    %v199 = vld [vmem:[#allocation7 + $0x10] sm:$0xf]
    %v200 = vld [vmem:[#allocation7 + $0x14] sm:$0xf]
    %v201 = vld [vmem:[#allocation7 + $0x18] sm:$0xf]
    %v202 = vld [vmem:[#allocation7 + $0x1c] sm:$0xf]
    %v203 = vld [vmem:[#allocation7 + $0x20] sm:$0xf]
    %v204 = vld [vmem:[#allocation7 + $0x24] sm:$0xf]
    %v205 = vld [vmem:[#allocation7 + $0x28] sm:$0xf]
    %v206 = vld [vmem:[#allocation7 + $0x2c] sm:$0xf]
    %v207 = vld [vmem:[#allocation7 + $0x30] sm:$0xf]
    %v208 = vld [vmem:[#allocation7 + $0x34] sm:$0xf]
    %v209 = vld [vmem:[#allocation7 + $0x38] sm:$0xf]
    %v210 = vld [vmem:[#allocation7 + $0x3c] sm:$0xf]
    %v211 = vld [vmem:[%s4] sm:$0x1]
    %v213 = vlaneseq
    %v214 = vshrl.u32 %v213, 7
    %v215 = vsub.s32 0, %v214
    %v216 = vrot.slane %v211, %v215
    %v234 = vunpack.c.l.b16 %v195
    %v235 = vunpack.c.l.b16 %v196
    %v236 = vunpack.c.l.b16 %v197
    %v237 = vunpack.c.l.b16 %v198
    %v238 = vunpack.c.l.b16 %v199
    %v239 = vunpack.c.l.b16 %v200
    %v240 = vunpack.c.l.b16 %v201
    %v241 = vunpack.c.l.b16 %v202
    %v242 = vunpack.c.l.b16 %v203
    %v243 = vunpack.c.l.b16 %v204
    %v244 = vunpack.c.l.b16 %v205
    %v245 = vunpack.c.l.b16 %v206
    %v246 = vunpack.c.l.b16 %v207
    %v247 = vunpack.c.l.b16 %v208
    %v248 = vunpack.c.l.b16 %v209
    %v249 = vunpack.c.l.b16 %v210
    %v250 = vpack.c.b16 %v235, %v234
    %v251 = vpack.c.b16 %v237, %v236
    %v252 = vpack.c.b16 %v239, %v238
    %v253 = vpack.c.b16 %v241, %v240
    %v254 = vpack.c.b16 %v243, %v242
    %v255 = vpack.c.b16 %v245, %v244
    %v256 = vpack.c.b16 %v247, %v246
    %v257 = vpack.c.b16 %v249, %v248
    %266 = vmatprep.subr.bf16.mxu0 0
    %267 = vmatpush1.bf16.msra.mxu0 %v257
    %268 = vmatprep.subr.bf16.mxu0 0
    %269 = vmatpush1.bf16.msra.mxu0 %v256
    %270 = vmatprep.subr.bf16.mxu0 0
    %271 = vmatpush1.bf16.msra.mxu0 %v255
    %272 = vmatprep.subr.bf16.mxu0 0
    %273 = vmatpush1.bf16.msra.mxu0 %v254
    %274 = vmatprep.subr.bf16.mxu0 0
    %275 = vmatpush1.bf16.msra.mxu0 %v253
    %276 = vmatprep.subr.bf16.mxu0 0
    %277 = vmatpush1.bf16.msra.mxu0 %v252
    %278 = vmatprep.subr.bf16.mxu0 0
    %279 = vmatpush1.bf16.msra.mxu0 %v251
    %280 = vmatprep.subr.bf16.mxu0 0
    %281 = vmatpush1.bf16.msra.mxu0 %v250
    %282 = vmatprep.subr.bf16.mxu0 0
    %283 = vmatpush2.bf16.msra.mxu0 0
    %284 = vmatprep.subr.bf16.mxu0 0
    %285 = vmatpush2.bf16.msra.mxu0 0
    %286 = vmatprep.subr.bf16.mxu0 0
    %287 = vmatpush2.bf16.msra.mxu0 0
    %288 = vmatprep.subr.bf16.mxu0 0
    %289 = vmatpush2.bf16.msra.mxu0 0
    %290 = vmatprep.subr.bf16.mxu0 0
    %291 = vmatpush2.bf16.msra.mxu0 0
    %292 = vmatprep.subr.bf16.mxu0 0
    %293 = vmatpush2.bf16.msra.mxu0 0
    %294 = vmatprep.subr.bf16.mxu0 0
    %295 = vmatpush2.bf16.msra.mxu0 0
    %296 = vmatprep.subr.bf16.mxu0 0
    %297 = vmatpush2.bf16.msra.mxu0 0
    %298 = vmatprep.mubr.bf16.mxu0 0
    %299 = vmatmul.mubr.bf16.gmra.mxu0 %v194
    %v300 = vpop.f32.mrf.mxu0
    %v301 = vadd.f32 %v216, %v300
    %v302 = vpop.f32.mrf.mxu0
    %v303 = vpop.f32.mrf.mxu0
    %v304 = vpop.f32.mrf.mxu0
    %305 = vdwg.mxu0
    %v306 = vmax.f32 %v301, 0.0
    %v307 = vpack.c.bf16 %v306, %v306
    %v308 = vld [vmem:[#allocation8] sm:$0xf]
    %v309 = vld [vmem:[#allocation8 + $0x4] sm:$0xf]
    %v310 = vld [vmem:[#allocation8 + $0x8] sm:$0xf]
    %v311 = vld [vmem:[#allocation8 + $0xc] sm:$0xf]
    %v312 = vld [vmem:[#allocation8 + $0x10] sm:$0xf]
    %v313 = vld [vmem:[#allocation8 + $0x14] sm:$0xf]
    %v314 = vld [vmem:[#allocation8 + $0x18] sm:$0xf]
    %v315 = vld [vmem:[#allocation8 + $0x1c] sm:$0xf]
    %v316 = vld [vmem:[#allocation8 + $0x20] sm:$0xf]
    %v317 = vld [vmem:[#allocation8 + $0x24] sm:$0xf]
    %v318 = vld [vmem:[#allocation8 + $0x28] sm:$0xf]
    %v319 = vld [vmem:[#allocation8 + $0x2c] sm:$0xf]
    %v320 = vld [vmem:[#allocation8 + $0x30] sm:$0xf]
    %v321 = vld [vmem:[#allocation8 + $0x34] sm:$0xf]
    %v322 = vld [vmem:[#allocation8 + $0x38] sm:$0xf]
    %v323 = vld [vmem:[#allocation8 + $0x3c] sm:$0xf]
    %v324 = vld [vmem:[%s6] sm:$0x1]
    %v326 = vlaneseq
    %v327 = vshrl.u32 %v326, 7
    %v328 = vsub.s32 0, %v327
    %v329 = vrot.slane %v324, %v328
    %v347 = vunpack.c.l.b16 %v308
    %v348 = vunpack.c.l.b16 %v309
    %v349 = vunpack.c.l.b16 %v310
    %v350 = vunpack.c.l.b16 %v311
    %v351 = vunpack.c.l.b16 %v312
    %v352 = vunpack.c.l.b16 %v313
    %v353 = vunpack.c.l.b16 %v314
    %v354 = vunpack.c.l.b16 %v315
    %v355 = vunpack.c.l.b16 %v316
    %v356 = vunpack.c.l.b16 %v317
    %v357 = vunpack.c.l.b16 %v318
    %v358 = vunpack.c.l.b16 %v319
    %v359 = vunpack.c.l.b16 %v320
    %v360 = vunpack.c.l.b16 %v321
    %v361 = vunpack.c.l.b16 %v322
    %v362 = vunpack.c.l.b16 %v323
    %v363 = vpack.c.b16 %v348, %v347
    %v364 = vpack.c.b16 %v350, %v349
    %v365 = vpack.c.b16 %v352, %v351
    %v366 = vpack.c.b16 %v354, %v353
    %v367 = vpack.c.b16 %v356, %v355
    %v368 = vpack.c.b16 %v358, %v357
    %v369 = vpack.c.b16 %v360, %v359
    %v370 = vpack.c.b16 %v362, %v361
    %379 = vmatprep.subr.bf16.mxu0 0
    %380 = vmatpush1.bf16.msra.mxu0 %v370
    %381 = vmatprep.subr.bf16.mxu0 0
    %382 = vmatpush1.bf16.msra.mxu0 %v369
    %383 = vmatprep.subr.bf16.mxu0 0
    %384 = vmatpush1.bf16.msra.mxu0 %v368
    %385 = vmatprep.subr.bf16.mxu0 0
    %386 = vmatpush1.bf16.msra.mxu0 %v367
    %387 = vmatprep.subr.bf16.mxu0 0
    %388 = vmatpush1.bf16.msra.mxu0 %v366
    %389 = vmatprep.subr.bf16.mxu0 0
    %390 = vmatpush1.bf16.msra.mxu0 %v365
    %391 = vmatprep.subr.bf16.mxu0 0
    %392 = vmatpush1.bf16.msra.mxu0 %v364
    %393 = vmatprep.subr.bf16.mxu0 0
    %394 = vmatpush1.bf16.msra.mxu0 %v363
    %395 = vmatprep.subr.bf16.mxu0 0
    %396 = vmatpush2.bf16.msra.mxu0 0
    %397 = vmatprep.subr.bf16.mxu0 0
    %398 = vmatpush2.bf16.msra.mxu0 0
    %399 = vmatprep.subr.bf16.mxu0 0
    %400 = vmatpush2.bf16.msra.mxu0 0
    %401 = vmatprep.subr.bf16.mxu0 0
    %402 = vmatpush2.bf16.msra.mxu0 0
    %403 = vmatprep.subr.bf16.mxu0 0
    %404 = vmatpush2.bf16.msra.mxu0 0
    %405 = vmatprep.subr.bf16.mxu0 0
    %406 = vmatpush2.bf16.msra.mxu0 0
    %407 = vmatprep.subr.bf16.mxu0 0
    %408 = vmatpush2.bf16.msra.mxu0 0
    %409 = vmatprep.subr.bf16.mxu0 0
    %410 = vmatpush2.bf16.msra.mxu0 0
    %411 = vmatprep.mubr.bf16.mxu0 0
    %412 = vmatmul.mubr.bf16.gmra.mxu0 %v307
    %v413 = vpop.f32.mrf.mxu0
    %v414 = vadd.f32 %v329, %v413
    %v415 = vpop.f32.mrf.mxu0
    %v416 = vpop.f32.mrf.mxu0
    %v417 = vpop.f32.mrf.mxu0
    %418 = vdwg.mxu0
    %419 = vst [vmem:[#allocation10] sm:$0xff] %v414
    // Predicated region
    $region46: #{tpu_custom_call.1} parent=1 // pred_check
      _
    $region47: #{tpu_custom_call.1} parent=1 // pred_check_branch
      %421 = sbr.rel (0) target = $region49
    $region48: #{tpu_custom_call.1} parent=1 // pred_region
      %s423 = ssub.s32 128, 128
      %424 = vsyncadd [#allocation4], %s423
      %s426 = sshll.u32 [#allocation10], 4
      %s427 = int_to_ptr.vmem [resolvable:$true] %s426
      %429 = dma.vmem_to_hbm [thread:$0]  %s427, 128, %s7, [#allocation4]
    $region49: #{tpu_custom_call.1} parent=1 // pred_fallthru
      _
    // Predicated region
    $region50: #{tpu_custom_call.1} parent=1 // pred_check
      _
    $region51: #{tpu_custom_call.1} parent=1 // pred_check_branch
      %431 = sbr.rel (0) target = $region53
    $region52: #{tpu_custom_call.1} parent=1 // pred_region
      %432 = dma.done [#allocation4], 128
    $region53: #{tpu_custom_call.1} parent=1 // pred_fallthru
      _
    %433 = vsyncpa [#allocation3], 1
    %434 = vsyncpa [#allocation6], 1
    %435 = vsyncpa [#allocation9], 1
    %436 = vsyncpa [#allocation4], 1

</llo_original>
